<compile_context>
chip_gen: v7x
topology: tpu7x:2x2x1
jax: 0.10.0
libtpu: 0.0.40
codegen_flags: <defaults>
</compile_context>

<pallas_src>
from functools import partial

import jax
import jax.numpy as jnp
from jax import lax
from jax.experimental import pallas as pl
from jax.experimental.pallas import tpu as pltpu


def _uniform_bits(counter_i32):
    """lowbias32 integer hash: int32 counter -> pseudo-uniform uint32 bits."""
    z = counter_i32.astype(jnp.uint32)
    z = z ^ (z >> 16)
    z = z * jnp.uint32(0x7FEB352D)
    z = z ^ (z >> 15)
    z = z * jnp.uint32(0x846CA68B)
    z = z ^ (z >> 16)
    return z


def _act_dropout_kernel(seed_ref, x_ref, o_ref, *, p, filterwise, activation,
                        total_cols):
    a = activation(x_ref[...])                       # keep input dtype (bf16/f32)

    if p <= 0.0:                                     # no dropout at all
        o_ref[...] = a.astype(o_ref.dtype)
        return
    if p >= 1.0:                                     # torch: everything dropped
        o_ref[...] = jnp.zeros(a.shape, o_ref.dtype)
        return

    bm, bn = a.shape
    i = pl.program_id(0)
    j = pl.program_id(1)
    # Mix the seed so nearby seeds give unrelated masks (cheap scalar op).
    seed = seed_ref[0] * jnp.int32(0x61C88647)

    # Drop iff bits < threshold  =>  P(drop) = p, P(keep) = 1 - p.
    threshold = jnp.uint32(min(int(p * float(1 << 32)), (1 << 32) - 1))
    scale = 1.0 / (1.0 - p)                          # inverted-dropout scaling

    if filterwise:
        # One random value per (sample, channel) row (F.dropout2d semantics).
        # Depends only on the global row index -> all column tiles agree.
        row = lax.broadcasted_iota(jnp.int32, (bm, 1), 0) + (i * bm + seed)
        keep = _uniform_bits(row) >= threshold                    # (bm, 1)
        mult = jnp.where(keep, scale, 0.0).astype(a.dtype)        # (bm, 1)
        o_ref[...] = (a * mult).astype(o_ref.dtype)               # lane broadcast
    else:
        # Counter-based bits from the global element index: mask is a pure
        # function of (position, seed), independent of tiling / grid order.
        off = i * bm * total_cols + j * bn + seed                 # scalar int32
        lin = (lax.broadcasted_iota(jnp.int32, (bm, bn), 0) * total_cols
               + lax.broadcasted_iota(jnp.int32, (bm, bn), 1) + off)
        keep = _uniform_bits(lin) >= threshold                    # (bm, bn)
        o_ref[...] = jnp.where(keep, a * scale, 0.0).astype(o_ref.dtype)


def activation_dropout(x, seed, *, dropout_probability=0.1,
                       is_filterwise_dropout=False, activation=jax.nn.relu,
                       block_rows=256, block_cols=2048):
    """Pallas equivalent of ActivationDropout.forward for NCHW input `x`."""
    assert block_rows % 8 == 0 and block_cols % 128 == 0
    N, C, H, W = x.shape
    R, S = N * C, H * W
    x2 = x.reshape(R, S)

    # Block shape: either the full extent or a multiple of (8, 128), capped so
    # that in+out double-buffered blocks stay ~8 MiB (fits v7x's 64 MiB VMEM).
    bm = R if R <= block_rows else block_rows
    bn = S if S <= block_cols else block_cols
    grid = (pl.cdiv(R, bm), pl.cdiv(S, bn))

    seed_arr = jnp.asarray([seed], dtype=jnp.int32)

    kernel = partial(
        _act_dropout_kernel,
        p=float(dropout_probability),
        filterwise=bool(is_filterwise_dropout),
        activation=activation,
        total_cols=S,
    )

    out2 = pl.pallas_call(
        kernel,
        out_shape=jax.ShapeDtypeStruct((R, S), x.dtype),
        grid_spec=pltpu.PrefetchScalarGridSpec(
            num_scalar_prefetch=1,                     # seed lands in SMEM
            grid=grid,
            in_specs=[pl.BlockSpec((bm, bn), lambda i, j, seed: (i, j))],
            out_specs=pl.BlockSpec((bm, bn), lambda i, j, seed: (i, j)),
        ),
        compiler_params=pltpu.CompilerParams(
            # Mask is position-based -> order-independent -> both axes parallel
            # (shards across both TensorCores on v7x; neutral on v5e/v6e).
            dimension_semantics=("parallel", "parallel"),
            vmem_limit_bytes=32 * 1024 * 1024,
        ),
    )(seed_arr, x2)

    return out2.reshape(N, C, H, W)


if __name__ == "__main__":
    key = jax.random.PRNGKey(0)
    # Small NCHW activation map: batch=2, channels=4, spatial=16x16.
    x = jax.random.normal(key, (2, 4, 16, 16), dtype=jnp.float32)
    p = 0.25

    # Elementwise dropout (F.dropout path)
    y_elem = activation_dropout(
        x, seed=1234, dropout_probability=p,
        is_filterwise_dropout=False, activation=jax.nn.relu)
    y_elem = jax.block_until_ready(y_elem)

    # Filterwise dropout (F.dropout2d path)
    y_filt = activation_dropout(
        x, seed=5678, dropout_probability=p,
        is_filterwise_dropout=True, activation=jax.nn.relu)
    y_filt = jax.block_until_ready(y_filt)

    # Sanity checks: shape/dtype preserved, relu applied (no negatives),
    # kept values are exactly relu(x) / (1 - p), dropped values are 0.
    assert y_elem.shape == x.shape and y_elem.dtype == x.dtype
    assert y_filt.shape == x.shape and y_filt.dtype == x.dtype
    assert float(jnp.min(y_elem)) >= 0.0 and float(jnp.min(y_filt)) >= 0.0

    ref = jax.nn.relu(x) / (1.0 - p)
    # elementwise: every value is either 0 (dropped) or relu(x)/(1-p) (kept)
    assert bool(jnp.all((y_elem == 0.0) | (jnp.abs(y_elem - ref) < 1e-5)))
    # filterwise: each (n, c) channel is either all-zero or exactly relu(x)/(1-p)
    chan_kept = jnp.any(y_filt != 0.0, axis=(2, 3), keepdims=True)
    assert bool(jnp.all(jnp.where(chan_kept, jnp.abs(y_filt - ref) < 1e-5,
                                  y_filt == 0.0)))

    print("KERNEL_OK")
</pallas_src>

<mosaic_0001>
module attributes {stable_mosaic.version = 11 : i64} {
  func.func @_act_dropout_kernel(%arg0: i32, %arg1: i32, %arg2: memref<1xi32, #tpu.memory_space<smem>>, %arg3: memref<8x256xf32, #tpu.memory_space<vmem>>, %arg4: memref<8x256xf32, #tpu.memory_space<vmem>>) attributes {dimension_semantics = [#tpu.dimension_semantics<parallel>, #tpu.dimension_semantics<parallel>], iteration_bounds = array<i64: 1, 1>, scalar_prefetch = 1 : i64, scratch_operands = 0 : i64, tpu.core_type = #tpu.core_type<tc>, window_params = [{transform_indices = @transform_0, window_bounds = array<i64: 8, 256>}, {transform_indices = @transform_1, window_bounds = array<i64: 8, 256>}]} {
    %c0 = arith.constant 0 : index
    %c0_0 = arith.constant 0 : index
    %0 = vector.load %arg3[%c0, %c0_0] : memref<8x256xf32, #tpu.memory_space<vmem>>, vector<8x256xf32>
    %cst = arith.constant 0.000000e+00 : f32
    %1 = vector.broadcast %cst : f32 to vector<8x256xf32>
    %2 = arith.maximumf %0, %1 : vector<8x256xf32>
    %c0_1 = arith.constant 0 : index
    %3 = memref.load %arg2[%c0_1] : memref<1xi32, #tpu.memory_space<smem>>
    %c1640531527_i32 = arith.constant 1640531527 : i32
    %4 = arith.muli %3, %c1640531527_i32 : i32
    %c8_i32 = arith.constant 8 : i32
    %5 = arith.muli %arg0, %c8_i32 : i32
    %c256_i32 = arith.constant 256 : i32
    %6 = arith.muli %5, %c256_i32 : i32
    %c256_i32_2 = arith.constant 256 : i32
    %7 = arith.muli %arg1, %c256_i32_2 : i32
    %8 = arith.addi %6, %7 : i32
    %9 = arith.addi %8, %4 : i32
    %10 = tpu.iota {dimensions = array<i32: 0>} : vector<8x256xi32>
    %c256_i32_3 = arith.constant 256 : i32
    %11 = vector.broadcast %c256_i32_3 : i32 to vector<8x256xi32>
    %12 = arith.muli %10, %11 : vector<8x256xi32>
    %13 = tpu.iota {dimensions = array<i32: 1>} : vector<8x256xi32>
    %14 = arith.addi %12, %13 : vector<8x256xi32>
    %15 = vector.broadcast %9 : i32 to vector<8x256xi32>
    %16 = arith.addi %14, %15 : vector<8x256xi32>
    %c16_i32 = arith.constant 16 : i32
    %17 = vector.broadcast %c16_i32 : i32 to vector<8x256xi32>
    %18 = arith.shrui %16, %17 : vector<8x256xi32>
    %19 = arith.xori %16, %18 : vector<8x256xi32>
    %c2146121005_i32 = arith.constant 2146121005 : i32
    %20 = vector.broadcast %c2146121005_i32 : i32 to vector<8x256xi32>
    %21 = arith.muli %19, %20 : vector<8x256xi32>
    %c15_i32 = arith.constant 15 : i32
    %22 = vector.broadcast %c15_i32 : i32 to vector<8x256xi32>
    %23 = arith.shrui %21, %22 : vector<8x256xi32>
    %24 = arith.xori %21, %23 : vector<8x256xi32>
    %c-2073254261_i32 = arith.constant -2073254261 : i32
    %25 = vector.broadcast %c-2073254261_i32 : i32 to vector<8x256xi32>
    %26 = arith.muli %24, %25 : vector<8x256xi32>
    %c16_i32_4 = arith.constant 16 : i32
    %27 = vector.broadcast %c16_i32_4 : i32 to vector<8x256xi32>
    %28 = arith.shrui %26, %27 : vector<8x256xi32>
    %29 = arith.xori %26, %28 : vector<8x256xi32>
    %c1073741824_i32 = arith.constant 1073741824 : i32
    %30 = vector.broadcast %c1073741824_i32 : i32 to vector<8x256xi32>
    %31 = arith.cmpi uge, %29, %30 : vector<8x256xi32>
    %cst_5 = arith.constant 1.33333337 : f32
    %32 = vector.broadcast %cst_5 : f32 to vector<8x256xf32>
    %33 = arith.mulf %2, %32 : vector<8x256xf32>
    %cst_6 = arith.constant 0.000000e+00 : f32
    %34 = vector.broadcast %cst_6 : f32 to vector<8x256xf32>
    %35 = arith.select %31, %33, %34 : vector<8x256xi1>, vector<8x256xf32>
    %c0_7 = arith.constant 0 : index
    %c0_8 = arith.constant 0 : index
    %36 = vector.load %arg4[%c0_7, %c0_8] : memref<8x256xf32, #tpu.memory_space<vmem>>, vector<8x256xf32>
    tpu.vector_store %arg4[%c0_7, %c0_8], %35 {strides = array<i32>} : memref<8x256xf32, #tpu.memory_space<vmem>>, vector<8x256xf32>,
    return
  }
  func.func @transform_0(%arg0: i32, %arg1: i32, %arg2: memref<1xi32, #tpu.memory_space<smem>>) -> (i32, i32) {
    %c0_i32 = arith.constant 0 : i32
    return %arg0, %arg1 : i32, i32
  }
  func.func @transform_1(%arg0: i32, %arg1: i32, %arg2: memref<1xi32, #tpu.memory_space<smem>>) -> (i32, i32) {
    %c0_i32 = arith.constant 0 : i32
    return %arg0, %arg1 : i32, i32
  }
}

</mosaic_0001>

<llo_original>
// kernel: tpu_custom_call.1
$region0: #{tpu_custom_call.1}
  #allocation0 [shape = 'u32[]', space=smem, size = 0x4, offset = 0x4, fixed_abs, tag = 'smem constant byte address 0x4 - core index']
  #allocation1 [shape = 'u32[144,128]{1,0:T(1,128)}', space=vmem, size = 0x12000, scoped, tag = 'internal scratch']
  #allocation2 [shape = 's32[1]{0}', space=sflag, size = 0x4, scoped, tag = 'scoped memory for tpu_custom_call.1']
  #allocation3 [shape = 's32[1]{0:T(128)S(6)}', space=smem, size = 0x200, scoped, tag = 'prefetched SMEM operand 0']
  %s0 = inlined_call_operand.<no memory space> [shape: s32[1], index: 0, kind: input, shape index: {}]
  %s1 = inlined_call_operand.hbm [shape: f32[8,256], index: 1, kind: input, shape index: {}]
  %s2 = inlined_call_operand.hbm [shape: f32[8,256], index: 2, kind: output, shape index: {}]
  %s3 = sld [smem:[#allocation0]]
  $region18: #{tpu_custom_call.1} parent=0
    _
  %s5 = ssub.s32 1, %s3
  %s6 = scalar_select 0, %s5, %s3
  %7 = sst [smem:[#allocation3]] %s0
  $region1: #{tpu_custom_call.1} parent=0
    #allocation4 [shape = 'u8[8192]{0}', space=vmem, size = 0x2000, scoped, tag = 'input window, operand 1, single buffered']
    #allocation5 [shape = 's32[1]{0}', space=sflag, size = 0x4, scoped, tag = 'scoped memory for tpu_custom_call.1']
    #allocation6 [shape = 's32[1]{0}', space=sflag, size = 0x4, scoped, tag = 'scoped memory for tpu_custom_call.1']
    #allocation7 [shape = 'u8[8192]{0}', space=vmem, size = 0x2000, scoped, tag = 'output window, operand 0, single buffered']
    %8 = vsyncpa [#allocation5], 0
    %9 = vsyncpa [#allocation6], 0
    // Predicated region
    $region2: #{tpu_custom_call.1} parent=1 // pred_check
      _
    $region3: #{tpu_custom_call.1} parent=1 // pred_check_branch
      %11 = sbr.rel (0) target = $region5
    $region4: #{tpu_custom_call.1} parent=1 // pred_region
      %s13 = ssub.s32 256, 256
      %14 = vsyncadd [#allocation5], %s13
      %s16 = sshll.u32 [#allocation4], 4
      %s17 = int_to_ptr.vmem [resolvable:$true] %s16
      %19 = dma.hbm_to_vmem [thread:$0]  %s1, 256, %s17, [#allocation5]
    $region5: #{tpu_custom_call.1} parent=1 // pred_fallthru
      _
    // Predicated region
    $region6: #{tpu_custom_call.1} parent=1 // pred_check
      _
    $region7: #{tpu_custom_call.1} parent=1 // pred_check_branch
      %21 = sbr.rel (0) target = $region9
    $region8: #{tpu_custom_call.1} parent=1 // pred_region
      %22 = dma.done [#allocation5], 256
    $region9: #{tpu_custom_call.1} parent=1 // pred_fallthru
      _
    %v23 = vld [vmem:[#allocation4] sm:$0xff]
    %v24 = vld [vmem:[#allocation4 + $0x8] sm:$0xff]
    %v25 = vmax.f32 %v23, 0.0
    %v26 = vmax.f32 %v24, 0.0
    %s27 = sld [smem:[#allocation3]]
    %s28 = smul.u32 %s27, 1640531527
    %s29 = smul.u32 0, 2048
    %s30 = smul.u32 0, 256
    %s31 = sadd.s32 %s29, %s30
    %s32 = sadd.s32 %s31, %s28
    %v33 = vlaneseq
    %v34 = vshrl.u32 %v33, 7
    %v35 = vmul.u32 %v34, 256
    %v36 = vlaneseq
    %v37 = vand.u32 %v36, 127
    %v38 = vadd.s32 %v37, 128
    %v39 = vadd.s32 %v35, %v37
    %v40 = vadd.s32 %v35, %v38
    %v41 = vstv %s32
    %v42 = vadd.s32 %v39, %v41
    %v43 = vadd.s32 %v40, %v41
    %v44 = vshrl.u32 %v42, 16
    %v45 = vshrl.u32 %v43, 16
    %v46 = vxor.u32 %v42, %v44
    %v47 = vxor.u32 %v43, %v45
    %v48 = vmul.u32 %v46, 2146121005
    %v49 = vmul.u32 %v47, 2146121005
    %v50 = vshrl.u32 %v48, 15
    %v51 = vshrl.u32 %v49, 15
    %v52 = vxor.u32 %v48, %v50
    %v53 = vxor.u32 %v49, %v51
    %v54 = vmul.u32 %v52, 2221713035
    %v55 = vmul.u32 %v53, 2221713035
    %v56 = vshrl.u32 %v54, 16
    %v57 = vshrl.u32 %v55, 16
    %v58 = vxor.u32 %v54, %v56
    %v59 = vxor.u32 %v55, %v57
    %vm60 = vcmp.ge.u32.totalorder %v58, 1073741824
    %vm61 = vcmp.ge.u32.totalorder %v59, 1073741824
    %v62 = vmul.f32 %v25, 1.3333334
    %v63 = vmul.f32 %v26, 1.3333334
    %v64 = vsel %vm60, %v62, 0.0
    %v65 = vsel %vm61, %v63, 0.0
    %66 = vst [vmem:[#allocation7] sm:$0xff] %v64
    %67 = vst [vmem:[#allocation7 + $0x8] sm:$0xff] %v65
    // Predicated region
    $region10: #{tpu_custom_call.1} parent=1 // pred_check
      _
    $region11: #{tpu_custom_call.1} parent=1 // pred_check_branch
      %69 = sbr.rel (0) target = $region13
    $region12: #{tpu_custom_call.1} parent=1 // pred_region
      %s71 = ssub.s32 256, 256
      %72 = vsyncadd [#allocation6], %s71
      %s74 = sshll.u32 [#allocation7], 4
      %s75 = int_to_ptr.vmem [resolvable:$true] %s74
      %77 = dma.vmem_to_hbm [thread:$0]  %s75, 256, %s2, [#allocation6]
    $region13: #{tpu_custom_call.1} parent=1 // pred_fallthru
      _
    // Predicated region
    $region14: #{tpu_custom_call.1} parent=1 // pred_check
      _
    $region15: #{tpu_custom_call.1} parent=1 // pred_check_branch
      %79 = sbr.rel (0) target = $region17
    $region16: #{tpu_custom_call.1} parent=1 // pred_region
      %80 = dma.done [#allocation6], 256
    $region17: #{tpu_custom_call.1} parent=1 // pred_fallthru
      _
    %81 = vsyncpa [#allocation5], 1
    %82 = vsyncpa [#allocation6], 1

</llo_original>
